<compile_context>
chip_gen: v7x
topology: tpu7x:2x2x1
jax: 0.10.0
libtpu: 0.0.40
codegen_flags: <defaults>
</compile_context>

<pallas_src>
from functools import partial

import jax
import jax.numpy as jnp
from jax.experimental import pallas as pl
from jax.experimental.pallas import tpu as pltpu

# ---------------- config (mirrors the torch `config` object) ----------------
ENT_DIM = 32
REL_DIM = 32          # equal to ENT_DIM -> ent_p_rel is identity
GAMMA = 12.0
NORM_P = 2            # L2 norm


# ------------------------------ Pallas kernels ------------------------------
def _pos_kernel(h_ref, r_ref, t_ref, hp_ref, rp_ref, tp_ref, out_ref):
    # Whole-array (B, D) f32 blocks; tiny path, simplest correct form.
    h, r, t = h_ref[...], r_ref[...], t_ref[...]
    hp, rp, tp = hp_ref[...], rp_ref[...], tp_ref[...]
    hp_h_rp_h = jnp.sum(hp * h, axis=-1, keepdims=True) * rp + h
    tp_t_rp_t = jnp.sum(tp * t, axis=-1, keepdims=True) * rp + t
    s = hp_h_rp_h + r - tp_t_rp_t
    out_ref[...] = jnp.sqrt(jnp.sum(s * s, axis=-1, keepdims=True)) - GAMMA


def _fused_kernel(h_ref, r_ref, t_ref, hp_ref, rp_ref, tp_ref,
                  neg_ref, npp_ref, neg_out_ref, pos_out_ref, *, mode):
    # per-positive refs: (BT, D) f32
    # neg/npp refs:      (BT, D, N) bf16  -- N on the 128-lane axis, D on sublanes
    # outputs:           neg score (BT, N) f32 (lane-dense), pos score (BT, 1) f32
    h, r, t = h_ref[...], r_ref[...], t_ref[...]
    hp, rp, tp = hp_ref[...], rp_ref[...], tp_ref[...]

    # shared per-positive projections, computed once per tile
    hp_h_rp_h = jnp.sum(hp * h, axis=-1, keepdims=True) * rp + h   # (BT, D)
    tp_t_rp_t = jnp.sum(tp * t, axis=-1, keepdims=True) * rp + t   # (BT, D)

    pos_s = hp_h_rp_h + r - tp_t_rp_t                               # (BT, D)
    pos_out_ref[...] = (
        jnp.sqrt(jnp.sum(pos_s * pos_s, axis=-1, keepdims=True)) - GAMMA)

    neg = neg_ref[...].astype(jnp.float32)                          # (BT, D, N)
    npp = npp_ref[...].astype(jnp.float32)                          # (BT, D, N)
    # reduce over D on the sublane axis; rp broadcast is a lane splat
    np_neg = jnp.sum(npp * neg, axis=-2, keepdims=True)             # (BT, 1, N)
    proj_neg = np_neg * rp[:, :, None] + neg                        # (BT, D, N)

    if mode == "head-batch":
        s = proj_neg + (r - tp_t_rp_t)[:, :, None]
    else:  # tail-batch
        s = (hp_h_rp_h + r)[:, :, None] - proj_neg

    neg_out_ref[...] = jnp.sqrt(jnp.sum(s * s, axis=-2)) - GAMMA    # (BT, N)


# ----------------------------- tiling / VMEM glue -----------------------------
def _vmem_capacity_bytes():
    """Per-core VMEM capacity, generation-aware, with a conservative fallback."""
    try:
        info = pltpu.get_tpu_info()
        for name in ("vmem_capacity_bytes", "vmem_size_bytes", "vmem_bytes"):
            v = getattr(info, name, None)
            if v:
                return int(v)
    except Exception:
        pass
    return 64 << 20      # v7x per-TC physical; safe lower bound everywhere


def _rup(x, m):
    return ((x + m - 1) // m) * m


def _tile_vmem_bytes(bt, N, D, neg_itemsize):
    """Scoped-VMEM estimate for one grid step, including layout padding."""
    sub = 16 if neg_itemsize == 2 else 8
    # streamed (bt, D, N) neg + npp blocks, double-buffered (no lane padding:
    # N is on lanes, D is a multiple of the sublane pack)
    big = 2 * 2 * bt * _rup(D, sub) * _rup(N, 128) * neg_itemsize
    # six f32 (bt, D) per-positive blocks, double-buffered, D lane-padded to 128
    vecs = 6 * 2 * _rup(bt, 8) * _rup(D, 128) * 4
    # outputs: (bt, N) + (bt, 1) f32, double-buffered
    outs = 2 * _rup(bt, 8) * _rup(N, 128) * 4 + 2 * _rup(bt, 8) * 128 * 4
    return big + vecs + outs


def _choose_batch_tile(B, N, D, neg_itemsize, vmem_budget_bytes,
                       prefer_multi_step=True):
    """Largest legal batch tile whose working set fits the budget.

    Legality: bt divides B and (bt % 8 == 0 or bt == B) so the (bt, *) blocks
    satisfy the (8, 128) layout rule.  When possible keep >= 2 grid steps so
    the "parallel" axis can shard across v7x's 2 TensorCores.
    """
    cands = [bt for bt in range(1, B + 1)
             if B % bt == 0 and (bt % 8 == 0 or bt == B)]
    fits = [bt for bt in cands
            if _tile_vmem_bytes(bt, N, D, neg_itemsize) <= vmem_budget_bytes]
    if not fits:
        return min(cands)
    if prefer_multi_step:
        multi = [bt for bt in fits if B // bt >= 2]
        if multi:
            return max(multi)
    return max(fits)


# ----------------------------- pallas_call glue ------------------------------
def pos_score_pallas(h, r, t, hp, rp, tp):
    B, D = h.shape
    # Single whole-array invocation: the positive-only path is tiny.
    out = pl.pallas_call(
        _pos_kernel,
        out_shape=jax.ShapeDtypeStruct((B, 1), jnp.float32),
    )(h, r, t, hp, rp, tp)
    return out                                                     # (B, 1)


def fused_scores_pallas(h, r, t, hp, rp, tp, neg, npp, *, mode, bt=None):
    """Single pallas_call: returns (neg_score (B, N), pos_score (B, 1)).

    neg / npp must be laid out (B, D, N): negatives on the lane axis.
    """
    B, D = h.shape
    _, _, N = neg.shape
    itemsize = jnp.dtype(neg.dtype).itemsize

    cap = _vmem_capacity_bytes()
    budget = cap // 3                       # leave room for compiler scratch
    if bt is None:
        bt = _choose_batch_tile(B, N, D, itemsize, budget)
    assert B % bt == 0, f"batch tile {bt} must divide B={B}"
    grid = (B // bt,)

    tile_bytes = _tile_vmem_bytes(bt, N, D, itemsize)
    vmem_limit = int(min(cap, max(32 << 20, cap // 2, tile_bytes + (8 << 20))))

    vec_spec = pl.BlockSpec((bt, D), lambda i: (i, 0))              # per-pos slices
    big_spec = pl.BlockSpec((bt, D, N), lambda i: (i, 0, 0))        # streamed negs

    neg_score, pos_score = pl.pallas_call(
        partial(_fused_kernel, mode=mode),
        out_shape=(jax.ShapeDtypeStruct((B, N), jnp.float32),
                   jax.ShapeDtypeStruct((B, 1), jnp.float32)),
        grid=grid,
        in_specs=[vec_spec] * 6 + [big_spec, big_spec],
        out_specs=(pl.BlockSpec((bt, N), lambda i: (i, 0)),
                   pl.BlockSpec((bt, 1), lambda i: (i, 0))),
        compiler_params=pltpu.CompilerParams(
            dimension_semantics=("parallel",),
            vmem_limit_bytes=vmem_limit),
    )(h, r, t, hp, rp, tp, neg, npp)
    return neg_score, pos_score


# ------------------------------- TransD model --------------------------------
def _xavier_uniform(key, shape):
    fan_out, fan_in = shape  # nn.Embedding weight: (num_embeddings, dim)
    bound = (6.0 / (fan_in + fan_out)) ** 0.5
    return jax.random.uniform(key, shape, jnp.float32, -bound, bound)


class TransDPallas:
    def __init__(self, ent_num, rel_num, key):
        k1, k2, k3, k4 = jax.random.split(key, 4)
        # Entity tables (the large, bandwidth-dominant ones) stored in bf16.
        self.ent_embd = _xavier_uniform(k1, (ent_num, ENT_DIM)).astype(jnp.bfloat16)
        self.ent_p = _xavier_uniform(k3, (ent_num, ENT_DIM)).astype(jnp.bfloat16)
        # Relation tables are small; keep f32 (max_norm path stays exact).
        self.rel_embd = _xavier_uniform(k2, (rel_num, REL_DIM))
        self.rel_p = _xavier_uniform(k4, (rel_num, REL_DIM))

    def _rel_lookup(self, idx):
        # nn.Embedding(max_norm=1.0): rows with norm > 1 scaled by 1/(norm+1e-7)
        # at lookup (matches torch.embedding_renorm_'s scale; the in-place
        # persistence into the stored weight is irrelevant for one forward).
        r = self.rel_embd[idx]
        n = jnp.linalg.norm(r, axis=-1, keepdims=True)
        scale = jnp.where(n > 1.0, 1.0 / (n + 1e-7), 1.0)
        return r * scale

    def _embds(self, pos_sample):
        h = self.ent_embd[pos_sample[:, 0]].astype(jnp.float32)
        r = self._rel_lookup(pos_sample[:, 1])
        t = self.ent_embd[pos_sample[:, 2]].astype(jnp.float32)
        hp = self.ent_p[pos_sample[:, 0]].astype(jnp.float32)
        rp = self.rel_p[pos_sample[:, 1]]
        tp = self.ent_p[pos_sample[:, 2]].astype(jnp.float32)
        return h, r, t, hp, rp, tp

    def _neg_embds(self, neg_sample):
        # Gather + fold the lane-dense transpose into the XLA gather:
        # (B, N, D) -> (B, D, N), kept bf16 until the in-kernel upcast.
        neg = jnp.transpose(self.ent_embd[neg_sample], (0, 2, 1))
        npp = jnp.transpose(self.ent_p[neg_sample], (0, 2, 1))
        return neg, npp

    def forward(self, pos_sample, neg_sample=None, mode=None, bt=None):
        """Matches the torch forward: pos-only -> (B, 1); with negs -> (B, N)."""
        h, r, t, hp, rp, tp = self._embds(pos_sample)
        if neg_sample is None:
            return pos_score_pallas(h, r, t, hp, rp, tp)
        if mode not in ("head-batch", "tail-batch"):
            raise ValueError("mode %s not supported" % mode)
        neg, npp = self._neg_embds(neg_sample)
        neg_score, _ = fused_scores_pallas(h, r, t, hp, rp, tp, neg, npp,
                                           mode=mode, bt=bt)
        return neg_score

    def forward_fused(self, pos_sample, neg_sample, mode, bt=None):
        """One pallas_call returning (neg_score (B, N), pos_score (B, 1))."""
        if mode not in ("head-batch", "tail-batch"):
            raise ValueError("mode %s not supported" % mode)
        h, r, t, hp, rp, tp = self._embds(pos_sample)
        neg, npp = self._neg_embds(neg_sample)
        return fused_scores_pallas(h, r, t, hp, rp, tp, neg, npp,
                                   mode=mode, bt=bt)


# ------------------------------ pure-JAX reference ----------------------------
def _ref_forward(model, pos_sample, neg_sample=None, mode=None):
    h, r, t, hp, rp, tp = model._embds(pos_sample)
    h, r, t, hp, rp, tp = (x[:, None, :] for x in (h, r, t, hp, rp, tp))
    if neg_sample is None:
        hph = jnp.sum(hp * h, -1, keepdims=True) * rp + h
        tpt = jnp.sum(tp * t, -1, keepdims=True) * rp + t
        score = hph + r - tpt
    else:
        neg = model.ent_embd[neg_sample].astype(jnp.float32)
        npp = model.ent_p[neg_sample].astype(jnp.float32)
        npn = jnp.sum(npp * neg, -1, keepdims=True) * rp + neg
        if mode == "head-batch":
            tpt = jnp.sum(tp * t, -1, keepdims=True) * rp + t
            score = npn + (r - tpt)
        else:
            hph = jnp.sum(hp * h, -1, keepdims=True) * rp + h
            score = hph + r - npn
    return jnp.linalg.norm(score, ord=NORM_P, axis=-1) - GAMMA


# ------------------------------------ main ------------------------------------
if __name__ == "__main__":
    key = jax.random.PRNGKey(0)
    k_model, k_pos, k_neg = jax.random.split(key, 3)

    ENT_NUM, REL_NUM = 500, 50
    B, N = 16, 128      # N = 128 -> fully lane-dense neg/npp tiles & score rows

    model = TransDPallas(ENT_NUM, REL_NUM, k_model)

    kh, kr, kt = jax.random.split(k_pos, 3)
    pos_sample = jnp.stack(
        [jax.random.randint(kh, (B,), 0, ENT_NUM),
         jax.random.randint(kr, (B,), 0, REL_NUM),
         jax.random.randint(kt, (B,), 0, ENT_NUM)], axis=1).astype(jnp.int32)
    neg_sample = jax.random.randint(k_neg, (B, N), 0, ENT_NUM).astype(jnp.int32)

    # positive-only path (single whole-array kernel)
    pos_score = jax.block_until_ready(model.forward(pos_sample))            # (B, 1)
    # negative path: explicit bt=8 forces a 2-step pipelined "parallel" grid
    hb_score = jax.block_until_ready(
        model.forward(pos_sample, neg_sample, mode="head-batch", bt=8))     # (B, N)
    # fused API: auto (generation-aware) tile, both scores from one pallas_call
    tb_score, fused_pos = model.forward_fused(pos_sample, neg_sample,
                                              mode="tail-batch")
    tb_score = jax.block_until_ready(tb_score)
    fused_pos = jax.block_until_ready(fused_pos)

    # correctness vs pure-JAX reference (same bf16-stored tables, f32 math)
    ref_pos = _ref_forward(model, pos_sample)
    ref_hb = _ref_forward(model, pos_sample, neg_sample, "head-batch")
    ref_tb = _ref_forward(model, pos_sample, neg_sample, "tail-batch")

    assert pos_score.shape == (B, 1) and hb_score.shape == (B, N)
    assert tb_score.shape == (B, N) and fused_pos.shape == (B, 1)
    assert jnp.allclose(pos_score, ref_pos, atol=1e-4, rtol=1e-4)
    assert jnp.allclose(hb_score, ref_hb, atol=1e-4, rtol=1e-4)
    assert jnp.allclose(tb_score, ref_tb, atol=1e-4, rtol=1e-4)
    assert jnp.allclose(fused_pos, ref_pos, atol=1e-4, rtol=1e-4)
    assert jnp.allclose(fused_pos, pos_score, atol=1e-4, rtol=1e-4)

    print("KERNEL_OK")
</pallas_src>

<mosaic_0001>
module attributes {stable_mosaic.version = 11 : i64} {
  func.func @_pos_kernel(%arg0: memref<16x32xf32, #tpu.memory_space<vmem>>, %arg1: memref<16x32xf32, #tpu.memory_space<vmem>>, %arg2: memref<16x32xf32, #tpu.memory_space<vmem>>, %arg3: memref<16x32xf32, #tpu.memory_space<vmem>>, %arg4: memref<16x32xf32, #tpu.memory_space<vmem>>, %arg5: memref<16x32xf32, #tpu.memory_space<vmem>>, %arg6: memref<16x1xf32, #tpu.memory_space<vmem>>) attributes {dimension_semantics = [], scalar_prefetch = 0 : i64, scratch_operands = 0 : i64, tpu.core_type = #tpu.core_type<tc>} {
    %c0 = arith.constant 0 : index
    %c0_0 = arith.constant 0 : index
    %0 = vector.load %arg0[%c0, %c0_0] : memref<16x32xf32, #tpu.memory_space<vmem>>, vector<16x32xf32>
    %c0_1 = arith.constant 0 : index
    %c0_2 = arith.constant 0 : index
    %1 = vector.load %arg1[%c0_1, %c0_2] : memref<16x32xf32, #tpu.memory_space<vmem>>, vector<16x32xf32>
    %c0_3 = arith.constant 0 : index
    %c0_4 = arith.constant 0 : index
    %2 = vector.load %arg2[%c0_3, %c0_4] : memref<16x32xf32, #tpu.memory_space<vmem>>, vector<16x32xf32>
    %c0_5 = arith.constant 0 : index
    %c0_6 = arith.constant 0 : index
    %3 = vector.load %arg3[%c0_5, %c0_6] : memref<16x32xf32, #tpu.memory_space<vmem>>, vector<16x32xf32>
    %c0_7 = arith.constant 0 : index
    %c0_8 = arith.constant 0 : index
    %4 = vector.load %arg4[%c0_7, %c0_8] : memref<16x32xf32, #tpu.memory_space<vmem>>, vector<16x32xf32>
    %c0_9 = arith.constant 0 : index
    %c0_10 = arith.constant 0 : index
    %5 = vector.load %arg5[%c0_9, %c0_10] : memref<16x32xf32, #tpu.memory_space<vmem>>, vector<16x32xf32>
    %6 = arith.mulf %3, %0 : vector<16x32xf32>
    %cst = arith.constant dense<0.000000e+00> : vector<16xf32>
    %7 = vector.multi_reduction <add>, %6, %cst [1] : vector<16x32xf32> to vector<16xf32>
    %8 = vector.shape_cast %7 : vector<16xf32> to vector<16x1xf32>
    %9 = vector.broadcast %8 : vector<16x1xf32> to vector<16x32xf32>
    %10 = arith.mulf %9, %4 : vector<16x32xf32>
    %11 = arith.addf %10, %0 : vector<16x32xf32>
    %12 = arith.mulf %5, %2 : vector<16x32xf32>
    %cst_11 = arith.constant dense<0.000000e+00> : vector<16xf32>
    %13 = vector.multi_reduction <add>, %12, %cst_11 [1] : vector<16x32xf32> to vector<16xf32>
    %14 = vector.shape_cast %13 : vector<16xf32> to vector<16x1xf32>
    %15 = vector.broadcast %14 : vector<16x1xf32> to vector<16x32xf32>
    %16 = arith.mulf %15, %4 : vector<16x32xf32>
    %17 = arith.addf %16, %2 : vector<16x32xf32>
    %18 = arith.addf %11, %1 : vector<16x32xf32>
    %19 = arith.subf %18, %17 : vector<16x32xf32>
    %20 = arith.mulf %19, %19 : vector<16x32xf32>
    %cst_12 = arith.constant dense<0.000000e+00> : vector<16xf32>
    %21 = vector.multi_reduction <add>, %20, %cst_12 [1] : vector<16x32xf32> to vector<16xf32>
    %22 = vector.shape_cast %21 : vector<16xf32> to vector<16x1xf32>
    %23 = math.sqrt %22 : vector<16x1xf32>
    %cst_13 = arith.constant 1.200000e+01 : f32
    %24 = vector.broadcast %cst_13 : f32 to vector<16x1xf32>
    %25 = arith.subf %23, %24 : vector<16x1xf32>
    %c0_14 = arith.constant 0 : index
    %c0_15 = arith.constant 0 : index
    %26 = vector.load %arg6[%c0_14, %c0_15] : memref<16x1xf32, #tpu.memory_space<vmem>>, vector<16x1xf32>
    tpu.vector_store %arg6[%c0_14, %c0_15], %25 {strides = array<i32>} : memref<16x1xf32, #tpu.memory_space<vmem>>, vector<16x1xf32>,
    return
  }
}

</mosaic_0001>

<llo_original>
// kernel: tpu_custom_call.1
$region0: #{tpu_custom_call.1}
  #allocation0 [shape = 'u32[]', space=smem, size = 0x4, offset = 0x4, fixed_abs, tag = 'smem constant byte address 0x4 - core index']
  #allocation1 [shape = 'u32[144,128]{1,0:T(1,128)}', space=vmem, size = 0x12000, scoped, tag = 'internal scratch']
  %s0 = inlined_call_operand.hbm [shape: f32[16,32], index: 0, kind: input, shape index: {}]
  %s1 = inlined_call_operand.hbm [shape: f32[16,32], index: 1, kind: input, shape index: {}]
  %s2 = inlined_call_operand.hbm [shape: f32[16,32], index: 2, kind: input, shape index: {}]
  %s3 = inlined_call_operand.hbm [shape: f32[16,32], index: 3, kind: input, shape index: {}]
  %s4 = inlined_call_operand.hbm [shape: f32[16,32], index: 4, kind: input, shape index: {}]
  %s5 = inlined_call_operand.vmem [shape: f32[16,32], index: 5, kind: input, shape index: {}]
  %s6 = inlined_call_operand.vmem [shape: f32[16,1], index: 6, kind: output, shape index: {}]
  %s7 = sld [smem:[#allocation0]]
  $region54: #{tpu_custom_call.1} parent=0
    _
  %s9 = ssub.s32 1, %s7
  %s10 = scalar_select 0, %s9, %s7
  $region1: #{tpu_custom_call.1} parent=0
    #allocation2 [shape = 'u8[8192]{0}', space=vmem, size = 0x2000, scoped, tag = 'input window, operand 0, single buffered']
    #allocation3 [shape = 's32[1]{0}', space=sflag, size = 0x4, scoped, tag = 'scoped memory for tpu_custom_call.1']
    #allocation4 [shape = 'u8[8192]{0}', space=vmem, size = 0x2000, scoped, tag = 'input window, operand 1, single buffered']
    #allocation5 [shape = 's32[1]{0}', space=sflag, size = 0x4, scoped, tag = 'scoped memory for tpu_custom_call.1']
    #allocation6 [shape = 'u8[8192]{0}', space=vmem, size = 0x2000, scoped, tag = 'input window, operand 2, single buffered']
    #allocation7 [shape = 'u8[8192]{0}', space=vmem, size = 0x2000, scoped, tag = 'input window, operand 3, single buffered']
    #allocation8 [shape = 's32[1]{0}', space=sflag, size = 0x4, scoped, tag = 'scoped memory for tpu_custom_call.1']
    #allocation9 [shape = 'u8[8192]{0}', space=vmem, size = 0x2000, scoped, tag = 'input window, operand 4, single buffered']
    %11 = vsyncpa [#allocation3], 0
    %12 = vsyncpa [#allocation5], 0
    %13 = vsyncpa [#allocation8], 0
    // Predicated region
    $region2: #{tpu_custom_call.1} parent=1 // pred_check
      _
    $region3: #{tpu_custom_call.1} parent=1 // pred_check_branch
      %15 = sbr.rel (0) target = $region5
    $region4: #{tpu_custom_call.1} parent=1 // pred_region
      %s17 = ssub.s32 256, 256
      %18 = vsyncadd [#allocation3], %s17
      %s19 = sshll.u32 [#allocation2], 4
      %s20 = int_to_ptr.vmem [resolvable:$true] %s19
      %25 = dma.hbm_to_vmem [thread:$0]  %s0, 256, %s20, [#allocation3], 128, 128, 8
    $region5: #{tpu_custom_call.1} parent=1 // pred_fallthru
      _
    // Predicated region
    $region6: #{tpu_custom_call.1} parent=1 // pred_check
      _
    $region7: #{tpu_custom_call.1} parent=1 // pred_check_branch
      %27 = sbr.rel (0) target = $region9
    $region8: #{tpu_custom_call.1} parent=1 // pred_region
      %s29 = ssub.s32 256, 256
      %30 = vsyncadd [#allocation5], %s29
      %s31 = sshll.u32 [#allocation4], 4
      %s32 = int_to_ptr.vmem [resolvable:$true] %s31
      %37 = dma.hbm_to_vmem [thread:$0]  %s1, 256, %s32, [#allocation5], 128, 128, 8
    $region9: #{tpu_custom_call.1} parent=1 // pred_fallthru
      _
    // Predicated region
    $region10: #{tpu_custom_call.1} parent=1 // pred_check
      _
    $region11: #{tpu_custom_call.1} parent=1 // pred_check_branch
      %39 = sbr.rel (0) target = $region13
    $region12: #{tpu_custom_call.1} parent=1 // pred_region
      %s41 = ssub.s32 256, 256
      %42 = vsyncadd [#allocation5], %s41
      %s43 = sshll.u32 [#allocation6], 4
      %s44 = int_to_ptr.vmem [resolvable:$true] %s43
      %49 = dma.hbm_to_vmem [thread:$0]  %s2, 256, %s44, [#allocation5], 128, 128, 8
    $region13: #{tpu_custom_call.1} parent=1 // pred_fallthru
      _
    // Predicated region
    $region14: #{tpu_custom_call.1} parent=1 // pred_check
      _
    $region15: #{tpu_custom_call.1} parent=1 // pred_check_branch
      %51 = sbr.rel (0) target = $region17
    $region16: #{tpu_custom_call.1} parent=1 // pred_region
      %s53 = ssub.s32 256, 256
      %54 = vsyncadd [#allocation8], %s53
      %s55 = sshll.u32 [#allocation7], 4
      %s56 = int_to_ptr.vmem [resolvable:$true] %s55
      %61 = dma.hbm_to_vmem [thread:$0]  %s3, 256, %s56, [#allocation8], 128, 128, 8
    $region17: #{tpu_custom_call.1} parent=1 // pred_fallthru
      _
    // Predicated region
    $region18: #{tpu_custom_call.1} parent=1 // pred_check
      _
    $region19: #{tpu_custom_call.1} parent=1 // pred_check_branch
      %63 = sbr.rel (0) target = $region21
    $region20: #{tpu_custom_call.1} parent=1 // pred_region
      %s65 = ssub.s32 256, 256
      %66 = vsyncadd [#allocation8], %s65
      %s67 = sshll.u32 [#allocation9], 4
      %s68 = int_to_ptr.vmem [resolvable:$true] %s67
      %73 = dma.hbm_to_vmem [thread:$0]  %s4, 256, %s68, [#allocation8], 128, 128, 8
    $region21: #{tpu_custom_call.1} parent=1 // pred_fallthru
      _
    // Predicated region
    $region22: #{tpu_custom_call.1} parent=1 // pred_check
      _
    $region23: #{tpu_custom_call.1} parent=1 // pred_check_branch
      %75 = sbr.rel (0) target = $region25
    $region24: #{tpu_custom_call.1} parent=1 // pred_region
      _
    $region25: #{tpu_custom_call.1} parent=1 // pred_fallthru
      _
    // Predicated region
    $region26: #{tpu_custom_call.1} parent=1 // pred_check
      _
    $region27: #{tpu_custom_call.1} parent=1 // pred_check_branch
      %77 = sbr.rel (0) target = $region29
    $region28: #{tpu_custom_call.1} parent=1 // pred_region
      %78 = dma.done [#allocation3], 256
    $region29: #{tpu_custom_call.1} parent=1 // pred_fallthru
      _
    // Predicated region
    $region30: #{tpu_custom_call.1} parent=1 // pred_check
      _
    $region31: #{tpu_custom_call.1} parent=1 // pred_check_branch
      %80 = sbr.rel (0) target = $region33
    $region32: #{tpu_custom_call.1} parent=1 // pred_region
      %81 = dma.done [#allocation5], 256
    $region33: #{tpu_custom_call.1} parent=1 // pred_fallthru
      _
    // Predicated region
    $region34: #{tpu_custom_call.1} parent=1 // pred_check
      _
    $region35: #{tpu_custom_call.1} parent=1 // pred_check_branch
      %83 = sbr.rel (0) target = $region37
    $region36: #{tpu_custom_call.1} parent=1 // pred_region
      %84 = dma.done [#allocation5], 256
    $region37: #{tpu_custom_call.1} parent=1 // pred_fallthru
      _
    // Predicated region
    $region38: #{tpu_custom_call.1} parent=1 // pred_check
      _
    $region39: #{tpu_custom_call.1} parent=1 // pred_check_branch
      %86 = sbr.rel (0) target = $region41
    $region40: #{tpu_custom_call.1} parent=1 // pred_region
      %87 = dma.done [#allocation8], 256
    $region41: #{tpu_custom_call.1} parent=1 // pred_fallthru
      _
    // Predicated region
    $region42: #{tpu_custom_call.1} parent=1 // pred_check
      _
    $region43: #{tpu_custom_call.1} parent=1 // pred_check_branch
      %89 = sbr.rel (0) target = $region45
    $region44: #{tpu_custom_call.1} parent=1 // pred_region
      %90 = dma.done [#allocation8], 256
    $region45: #{tpu_custom_call.1} parent=1 // pred_fallthru
      _
    %v91 = vld [vmem:[#allocation2] sm:$0xff]
    %v92 = vld [vmem:[#allocation2 + $0x8] sm:$0xff]
    %v93 = vld [vmem:[#allocation4] sm:$0xff]
    %v94 = vld [vmem:[#allocation4 + $0x8] sm:$0xff]
    %v95 = vld [vmem:[#allocation6] sm:$0xff]
    %v96 = vld [vmem:[#allocation6 + $0x8] sm:$0xff]
    %v97 = vld [vmem:[#allocation7] sm:$0xff]
    %v98 = vld [vmem:[#allocation7 + $0x8] sm:$0xff]
    %v99 = vld [vmem:[#allocation9] sm:$0xff]
    %v100 = vld [vmem:[#allocation9 + $0x8] sm:$0xff]
    %v101 = vld [vmem:[%s5] sm:$0xff]
    %v102 = vld [vmem:[%s5 + $0x8] sm:$0xff]
    %v103 = vmul.f32 %v97, %v91
    %v104 = vmul.f32 %v98, %v92
    %vm105 = vcmask 261120
    %v106 = vsel %vm105, %v103, 0.0
    %107 = vadd.xlane.f32.xlu0 %v106
    %v108 = vpop.xlane.xlu0 %107
    %v109 = vsel %vm105, %v104, 0.0
    %110 = vadd.xlane.f32.xlu0 %v109
    %v111 = vpop.xlane.xlu0 %110
    %v112 = vmul.f32 %v108, %v99
    %v113 = vmul.f32 %v111, %v100
    %v114 = vadd.f32 %v112, %v91
    %v115 = vadd.f32 %v113, %v92
    %v116 = vmul.f32 %v101, %v95
    %v117 = vmul.f32 %v102, %v96
    %v118 = vsel %vm105, %v116, 0.0
    %119 = vadd.xlane.f32.xlu0 %v118
    %v120 = vpop.xlane.xlu0 %119
    %v121 = vsel %vm105, %v117, 0.0
    %122 = vadd.xlane.f32.xlu0 %v121
    %v123 = vpop.xlane.xlu0 %122
    %v124 = vmul.f32 %v120, %v99
    %v125 = vmul.f32 %v123, %v100
    %v126 = vadd.f32 %v124, %v95
    %v127 = vadd.f32 %v125, %v96
    %v128 = vadd.f32 %v114, %v93
    %v129 = vadd.f32 %v115, %v94
    %v130 = vsub.f32 %v128, %v126
    %v131 = vsub.f32 %v129, %v127
    %v132 = vmul.f32 %v130, %v130
    %v133 = vmul.f32 %v131, %v131
    %v134 = vsel %vm105, %v132, 0.0
    %135 = vadd.xlane.f32.xlu0 %v134
    %v136 = vpop.xlane.xlu0 %135
    %v137 = vsel %vm105, %v133, 0.0
    %138 = vadd.xlane.f32.xlu0 %v137
    %v139 = vpop.xlane.xlu0 %138
    %v140 = vrsqrt.pop %v136
    %v141 = vmul.f32 %v136, %v140
    %vm142 = vcmp.eq.f32.partialorder %v136, inf
    %v143 = vsel %vm142, %v136, %v141
    %vm144 = vcmp.eq.f32.partialorder %v136, 0.0
    %v145 = vand.u32 %v136, 2147483648
    %v146 = vsel %vm144, %v145, %v143
    %v147 = vrsqrt.pop %v139
    %v148 = vmul.f32 %v139, %v147
    %vm149 = vcmp.eq.f32.partialorder %v139, inf
    %v150 = vsel %vm149, %v139, %v148
    %vm151 = vcmp.eq.f32.partialorder %v139, 0.0
    %v152 = vand.u32 %v139, 2147483648
    %v153 = vsel %vm151, %v152, %v150
    %v154 = vsub.f32 %v146, 12.0
    %v155 = vsub.f32 %v153, 12.0
    %vm156 = vcmask 7168
    %157 = vst.msk [vmem:[%s6] sm:$0xff] %vm156, %v154
    %158 = vst.msk [vmem:[%s6 + $0x8] sm:$0xff] %vm156, %v155
    // Predicated region
    $region46: #{tpu_custom_call.1} parent=1 // pred_check
      _
    $region47: #{tpu_custom_call.1} parent=1 // pred_check_branch
      %160 = sbr.rel (0) target = $region49
    $region48: #{tpu_custom_call.1} parent=1 // pred_region
      _
    $region49: #{tpu_custom_call.1} parent=1 // pred_fallthru
      _
    // Predicated region
    $region50: #{tpu_custom_call.1} parent=1 // pred_check
      _
    $region51: #{tpu_custom_call.1} parent=1 // pred_check_branch
      %162 = sbr.rel (0) target = $region53
    $region52: #{tpu_custom_call.1} parent=1 // pred_region
      _
    $region53: #{tpu_custom_call.1} parent=1 // pred_fallthru
      _
    %163 = vsyncpa [#allocation3], 1
    %164 = vsyncpa [#allocation5], 1
    %165 = vsyncpa [#allocation8], 1

</llo_original>
